<compile_context>
chip_gen: v7x
topology: tpu7x:2x2x1
jax: 0.10.0
libtpu: 0.0.40
codegen_flags: <defaults>
</compile_context>

<pallas_src>
import jax
import jax.numpy as jnp
from jax.experimental import pallas as pl
from jax.experimental.pallas import tpu as pltpu


_MAX_CHUNKS = 4                  # concurrent DMAs for large inputs
_CHUNK_BYTES_THRESHOLD = 2 << 20  # only split the copy above ~2 MiB


def _make_copy_kernel(chunks):
    """Build a kernel that DMAs x -> o (HBM->HBM) in `len(chunks)` pieces.

    `chunks` is a static tuple of (start, size) pairs along the leading axis.
    All copies are started first (one semaphore each) and then waited, so the
    DMA engines stream the pieces concurrently.
    """

    def kernel(x_ref, o_ref, sems):
        copies = []
        for c, (start, size) in enumerate(chunks):
            if len(chunks) == 1:
                src, dst = x_ref, o_ref
            else:
                src = x_ref.at[pl.ds(start, size)]
                dst = o_ref.at[pl.ds(start, size)]
            cp = pltpu.make_async_copy(src, dst, sems.at[c])
            cp.start()
            copies.append(cp)
        for cp in copies:
            cp.wait()

    return kernel


def net_forward(x: jax.Array) -> jax.Array:
    """Pallas stand-in for Net.forward: identity via a direct HBM->HBM DMA."""
    if x.ndim == 0 or x.size == 0:
        # Nothing meaningful to DMA; identity is exact.
        return x

    itemsize = jnp.dtype(x.dtype).itemsize
    nbytes = x.size * itemsize

    # Split along the leading axis only when it cannot cut through the tiled
    # (second-minor, minor) layout dims, i.e. rank >= 3, and the copy is large
    # enough for concurrent DMAs to matter.
    if (
        x.ndim >= 3
        and nbytes >= _CHUNK_BYTES_THRESHOLD
        and x.shape[0] >= _MAX_CHUNKS
    ):
        n_chunks = _MAX_CHUNKS
    else:
        n_chunks = 1

    lead = x.shape[0]
    base, rem = divmod(lead, n_chunks)
    chunks = []
    start = 0
    for c in range(n_chunks):
        size = base + (1 if c < rem else 0)
        chunks.append((start, size))
        start += size

    kernel = _make_copy_kernel(tuple(chunks))

    return pl.pallas_call(
        kernel,
        out_shape=jax.ShapeDtypeStruct(x.shape, x.dtype),
        in_specs=[pl.BlockSpec(memory_space=pl.ANY)],   # raw HBM ref, no auto-DMA
        out_specs=pl.BlockSpec(memory_space=pl.ANY),    # raw HBM ref, written via DMA
        scratch_shapes=[pltpu.SemaphoreType.DMA((n_chunks,))],
        cost_estimate=pl.CostEstimate(
            flops=0,
            transcendentals=0,
            bytes_accessed=2 * nbytes,
        ),
    )(x)


if __name__ == "__main__":
    key = jax.random.PRNGKey(0)

    # Small NCHW input consistent with a generic vision-style module.
    x = jax.random.normal(key, (2, 4, 16, 16), dtype=jnp.float32)
    y = net_forward(x)
    jax.block_until_ready(y)
    assert y.shape == x.shape and y.dtype == x.dtype
    assert bool(jnp.allclose(y, x))

    # Exercise the multi-chunk (concurrent-DMA) path and a non-f32 dtype.
    x2 = jax.random.normal(
        jax.random.PRNGKey(1), (8, 8, 128, 128), dtype=jnp.bfloat16
    )
    y2 = net_forward(x2)
    jax.block_until_ready(y2)
    assert bool(jnp.array_equal(y2, x2))

    # Awkward (non-multiple-of-128) shape: now a single clean DMA, no pad/slice.
    x3 = jax.random.normal(jax.random.PRNGKey(2), (3, 5, 7), dtype=jnp.float32)
    y3 = net_forward(x3)
    jax.block_until_ready(y3)
    assert bool(jnp.allclose(y3, x3))

    print("KERNEL_OK")
</pallas_src>

<mosaic_0001>
module attributes {stable_mosaic.version = 11 : i64} {
  func.func @kernel(%arg0: memref<2x4x16x16xf32, #tpu.memory_space<any>>, %arg1: memref<2x4x16x16xf32, #tpu.memory_space<any>>, %arg2: memref<1x!tpu.dma_semaphore, #tpu.memory_space<semaphore_mem>>) attributes {dimension_semantics = [], scalar_prefetch = 0 : i64, scratch_operands = 1 : i64, tpu.core_type = #tpu.core_type<tc>} {
    %c0_i32 = arith.constant 0 : i32
    %0 = tpu.memref_slice %arg2[%c0_i32] : memref<1x!tpu.dma_semaphore, #tpu.memory_space<semaphore_mem>> -> memref<1x!tpu.dma_semaphore, #tpu.memory_space<semaphore_mem>>
    %1 = tpu.memref_squeeze %0 : memref<1x!tpu.dma_semaphore, #tpu.memory_space<semaphore_mem>> -> memref<!tpu.dma_semaphore, #tpu.memory_space<semaphore_mem>>
    tpu.enqueue_dma source(%arg0 : memref<2x4x16x16xf32, #tpu.memory_space<any>>) target(%arg1 : memref<2x4x16x16xf32, #tpu.memory_space<any>>) target_semaphore(%1 : memref<!tpu.dma_semaphore, #tpu.memory_space<semaphore_mem>>)
    %c0_i32_0 = arith.constant 0 : i32
    %2 = tpu.memref_slice %arg2[%c0_i32_0] : memref<1x!tpu.dma_semaphore, #tpu.memory_space<semaphore_mem>> -> memref<1x!tpu.dma_semaphore, #tpu.memory_space<semaphore_mem>>
    %3 = tpu.memref_squeeze %2 : memref<1x!tpu.dma_semaphore, #tpu.memory_space<semaphore_mem>> -> memref<!tpu.dma_semaphore, #tpu.memory_space<semaphore_mem>>
    tpu.wait_dma2 semaphore(%3 : memref<!tpu.dma_semaphore, #tpu.memory_space<semaphore_mem>>) src(%arg0 : memref<2x4x16x16xf32, #tpu.memory_space<any>>) dst(%arg1 : memref<2x4x16x16xf32, #tpu.memory_space<any>>)
    return
  }
}

</mosaic_0001>

<llo_original>
// kernel: tpu_custom_call.1
$region0: #{tpu_custom_call.1}
  #allocation0 [shape = 'u32[]', space=smem, size = 0x4, offset = 0x4, fixed_abs, tag = 'smem constant byte address 0x4 - core index']
  #allocation1 [shape = 'u32[144,128]{1,0:T(1,128)}', space=vmem, size = 0x12000, scoped, tag = 'internal scratch']
  #allocation2 [shape = 's32[1]{0}', space=sflag, size = 0x4, scoped, tag = 'scratch operand']
  #allocation3 [shape = 's32[]', space=sflag, size = 0x4, offset = 0, fixed_abs, tag = 'sflag constant byte address 0x0 - dummy sync flag']
  #allocation4 [shape = 'u32[0]{0}', space=smem, size = 0, offset = 0, fixed_abs, tag = 'smem constant byte address 0x0 - null']
  %s0 = inlined_call_operand.hbm [shape: f32[2,4,16,16], index: 0, kind: input, shape index: {}]
  %s1 = inlined_call_operand.hbm [shape: f32[2,4,16,16], index: 1, kind: output, shape index: {}]
  %s2 = sld [smem:[#allocation0]]
  $region2: #{tpu_custom_call.1} parent=0
    _
  %s4 = ssub.s32 1, %s2
  %s5 = scalar_select 0, %s4, %s2
  %s7 = sshll.u32 1, 14
  %s8 = sxor.u32 4294967295, %s7
  %s11 = sshll.u32 3, 24
  %s12 = sxor.u32 4294967295, %s11
  %s13 = sand.u32 0, %s12
  %s15 = sor.u32 %s13, 0
  %18 = dma.general %s0, 2048, %s1, [#allocation2], [#allocation3], [#allocation4], %s15, 0
  %s19 = smul.u32 2, 4
  %s20 = smul.u32 %s19, 16
  %s21 = smul.u32 %s20, 1
  %s22 = sshll.u32 %s21, 4
  %23 = dma.done [#allocation2], %s22
  %24 = vsyncmov [#allocation2]
  %s25 = vpop.sfrf %24
  %p26 = scmp.eq.s32.totalorder %s25, 0
  %p27 = pneg %p26
  %29 = shalt.err (%p27)

</llo_original>
